<compile_context>
chip_gen: v6e
topology: v6e:2x2x1
jax: 0.10.0
libtpu: 0.0.40
codegen_flags: <defaults>
</compile_context>

<pallas_src>
import functools

import jax
import jax.numpy as jnp
from jax.experimental import pallas as pl
from jax.experimental.pallas import tpu as pltpu

# CartPole-v1-like environment dimensions (env.observation_space.shape[0] == 4,
# env.action_space.n == 2) and hidden = 32 as in the module.
N_STATE = 4
HIDDEN = 32
N_ACTION = 2


def policy_kernel(x_ref, w1_ref, b1_ref, w2_ref, b2_ref, out_ref, *, approx):
    # x_ref: [N_STATE, TILE_B]  (batch on the lane axis -> lane-dense everywhere)
    cdt = w1_ref.dtype                      # compute dtype for MXU operands
    x = x_ref[...].astype(cdt)

    # fc1 + ReLU: [HIDDEN, N_STATE] @ [N_STATE, TILE_B] -> [HIDDEN, TILE_B]
    # (batch is the MXU N-dimension, lane-dense; f32 accumulation)
    h = jnp.dot(w1_ref[...], x, preferred_element_type=jnp.float32) + b1_ref[...]
    h = jnp.maximum(h, 0.0)

    # fc2: [N_ACTION, HIDDEN] @ [HIDDEN, TILE_B] -> [N_ACTION, TILE_B]
    logits = (jnp.dot(w2_ref[...], h.astype(cdt),
                      preferred_element_type=jnp.float32) + b2_ref[...])

    # Softmax over 2 actions == sigmoid of the logit difference (exact).
    # Sublane subtract + one EUP exp (+ one EUP approx reciprocal on the fast
    # path); no XLU cross-lane reduces.
    d = logits[1:2, :] - logits[0:1, :]          # [1, TILE_B]
    denom = 1.0 + jnp.exp(-d)
    if approx:
        p1 = pl.reciprocal(denom, approx=True)   # P(action 1)
    else:
        p1 = 1.0 / denom
    p0 = 1.0 - p1                                # P(action 0); rows sum to 1 exactly

    # Two direct lane-dense sub-slab stores (no concatenate relayout).
    out_ref[0:1, :] = p0.astype(out_ref.dtype)
    out_ref[1:2, :] = p1.astype(out_ref.dtype)


def _choose_tiling(batch, tile_b):
    """Pick (tile, n_blocks, b_pad) for the lane (batch) axis."""
    assert tile_b >= 128 and tile_b % 128 == 0
    b_align = pl.cdiv(batch, 128) * 128
    # Prefer >= 2 grid blocks so v7x's two TensorCores both engage
    # (harmless no-op on single-TC v5e/v6e); never go below 128 lanes.
    two_way = max(pl.cdiv(pl.cdiv(b_align, 2), 128) * 128, 128)
    tile = min(tile_b, two_way)
    # Re-shrink the tile to fit the batch tightly (same block count) so padding
    # never nearly doubles DMA/compute at awkward batch sizes.
    n_blocks = pl.cdiv(b_align, tile)
    tile = pl.cdiv(pl.cdiv(b_align, n_blocks), 128) * 128
    b_pad = n_blocks * tile
    return tile, n_blocks, b_pad


def policy_forward_fm(x_fm, w1, b1, w2, b2, *, tile_b=16384, precise=False):
    """Feature-major entry point (preferred: zero layout plumbing).

    x_fm: [n_state, B]  (batch on the minor axis; ideally already a multiple
          of 128 so no padding is needed).  Returns probs: [n_action, B].
    Weights are in native PyTorch layout: w1 [hidden, n_state], b1 [hidden, 1],
    w2 [n_action, hidden], b2 [n_action, 1].
    """
    n_state, batch = x_fm.shape
    assert n_state == N_STATE
    tile, n_blocks, b_pad = _choose_tiling(batch, tile_b)

    if b_pad != batch:
        # Only needed when the caller did not already lane-align the batch.
        x_fm = jnp.pad(x_fm, ((0, 0), (0, b_pad - batch)))

    cdt = jnp.float32 if precise else jnp.bfloat16
    w1c = w1.astype(cdt)
    w2c = w2.astype(cdt)
    b1c = b1.astype(jnp.float32)
    b2c = b2.astype(jnp.float32)

    kernel = functools.partial(policy_kernel, approx=not precise)

    probs_fm = pl.pallas_call(
        kernel,
        out_shape=jax.ShapeDtypeStruct((N_ACTION, b_pad), jnp.float32),
        grid=(n_blocks,),
        in_specs=[
            # Activations: new batch tile per grid step (lane-dense).
            pl.BlockSpec((N_STATE, tile), lambda i: (0, i)),
            # Weights/biases: index_map ignores the grid index -> stay resident
            # in VMEM across grid steps (no re-DMA).
            pl.BlockSpec((HIDDEN, N_STATE), lambda i: (0, 0)),
            pl.BlockSpec((HIDDEN, 1), lambda i: (0, 0)),
            pl.BlockSpec((N_ACTION, HIDDEN), lambda i: (0, 0)),
            pl.BlockSpec((N_ACTION, 1), lambda i: (0, 0)),
        ],
        out_specs=pl.BlockSpec((N_ACTION, tile), lambda i: (0, i)),
        compiler_params=pltpu.CompilerParams(
            # Batch tiles are independent -> shard across v7x's 2 TensorCores.
            dimension_semantics=("parallel",),
        ),
    )(x_fm, w1c, b1c, w2c, b2c)

    return probs_fm[:, :batch]


def policy_forward(x, w1, b1, w2, b2, **kwargs):
    """PyTorch-convention compatibility wrapper.

    x: [B, n_state] -> probs [B, n_action].  The transposes here are host-side
    layout plumbing; prefer policy_forward_fm for rollout batching.
    """
    return policy_forward_fm(x.T, w1, b1, w2, b2, **kwargs).T


def init_params(key):
    """Deterministic init mirroring PyTorch nn.Linear default:
    U(-1/sqrt(fan_in), 1/sqrt(fan_in)) for both weight and bias.
    Weights are kept in PyTorch's native [out_features, in_features] layout."""
    k1, k2, k3, k4 = jax.random.split(key, 4)
    bound1 = 1.0 / jnp.sqrt(float(N_STATE))
    bound2 = 1.0 / jnp.sqrt(float(HIDDEN))
    w1 = jax.random.uniform(k1, (HIDDEN, N_STATE), jnp.float32, -bound1, bound1)
    b1 = jax.random.uniform(k2, (HIDDEN, 1), jnp.float32, -bound1, bound1)
    w2 = jax.random.uniform(k3, (N_ACTION, HIDDEN), jnp.float32, -bound2, bound2)
    b2 = jax.random.uniform(k4, (N_ACTION, 1), jnp.float32, -bound2, bound2)
    return w1, b1, w2, b2


if __name__ == "__main__":
    key = jax.random.PRNGKey(0)
    pkey, xkey1, xkey2 = jax.random.split(key, 3)
    w1, b1, w2, b2 = init_params(pkey)

    # --- 1) PyTorch-convention small batch, precise f32 path (strict check) ---
    batch = 8
    x = jax.random.normal(xkey1, (batch, N_STATE), jnp.float32)
    probs = policy_forward(x, w1, b1, w2, b2, precise=True)
    jax.block_until_ready(probs)

    h_ref = jnp.maximum(x @ w1.T + b1[:, 0], 0.0)
    probs_ref = jax.nn.softmax(h_ref @ w2.T + b2[:, 0], axis=-1)
    assert probs.shape == (batch, N_ACTION)
    assert jnp.allclose(probs, probs_ref, atol=1e-5, rtol=1e-5)
    assert jnp.allclose(jnp.sum(probs, axis=-1), 1.0, atol=1e-5)

    # --- 2) Feature-major, lane-aligned batch: zero wrapper plumbing, fast
    #        default path (bf16 MXU operands + approx-reciprocal sigmoid). ---
    batch_fm = 256  # multiple of 128 -> no padding; 2 blocks -> both v7x TCs
    x_fm = jax.random.normal(xkey2, (N_STATE, batch_fm), jnp.float32)
    probs_fm = policy_forward_fm(x_fm, w1, b1, w2, b2)
    jax.block_until_ready(probs_fm)

    h2 = jnp.maximum(w1 @ x_fm + b1, 0.0)
    probs_fm_ref = jax.nn.softmax(w2 @ h2 + b2, axis=0)
    assert probs_fm.shape == (N_ACTION, batch_fm)
    # bf16 operands + approx reciprocal -> relaxed tolerance.
    assert jnp.allclose(probs_fm, probs_fm_ref, atol=5e-3, rtol=5e-3)
    assert jnp.allclose(jnp.sum(probs_fm, axis=0), 1.0, atol=1e-5)

    print("KERNEL_OK")
</pallas_src>

<mosaic_0001>
module attributes {stable_mosaic.version = 11 : i64} {
  func.func @policy_kernel(%arg0: i32, %arg1: memref<4x128xf32, #tpu.memory_space<vmem>>, %arg2: memref<32x4xf32, #tpu.memory_space<vmem>>, %arg3: memref<32x1xf32, #tpu.memory_space<vmem>>, %arg4: memref<2x32xf32, #tpu.memory_space<vmem>>, %arg5: memref<2x1xf32, #tpu.memory_space<vmem>>, %arg6: memref<2x128xf32, #tpu.memory_space<vmem>>) attributes {dimension_semantics = [#tpu.dimension_semantics<parallel>], iteration_bounds = array<i64: 1>, scalar_prefetch = 0 : i64, scratch_operands = 0 : i64, tpu.core_type = #tpu.core_type<tc>, window_params = [{transform_indices = @transform_0, window_bounds = array<i64: 4, 128>}, {pipeline_mode = #tpu.pipeline_mode<synchronous>, transform_indices = @transform_1, window_bounds = array<i64: 32, 4>}, {pipeline_mode = #tpu.pipeline_mode<synchronous>, transform_indices = @transform_2, window_bounds = array<i64: 32, 1>}, {pipeline_mode = #tpu.pipeline_mode<synchronous>, transform_indices = @transform_3, window_bounds = array<i64: 2, 32>}, {pipeline_mode = #tpu.pipeline_mode<synchronous>, transform_indices = @transform_4, window_bounds = array<i64: 2, 1>}, {transform_indices = @transform_5, window_bounds = array<i64: 2, 128>}]} {
    %c0 = arith.constant 0 : index
    %c0_0 = arith.constant 0 : index
    %0 = vector.load %arg1[%c0, %c0_0] : memref<4x128xf32, #tpu.memory_space<vmem>>, vector<4x128xf32>
    %c0_1 = arith.constant 0 : index
    %c0_2 = arith.constant 0 : index
    %1 = vector.load %arg2[%c0_1, %c0_2] : memref<32x4xf32, #tpu.memory_space<vmem>>, vector<32x4xf32>
    %cst = arith.constant dense<0.000000e+00> : vector<32x128xf32>
    %2 = tpu.matmul %1, %0, %cst {dimension_numbers = #tpu.dot_dimension_numbers<[1], [0], [0], [1], [0, 0, 1, 1], [], []>} : vector<32x4xf32>, vector<4x128xf32>, vector<32x128xf32> -> vector<32x128xf32>
    %c0_3 = arith.constant 0 : index
    %c0_4 = arith.constant 0 : index
    %3 = vector.load %arg3[%c0_3, %c0_4] : memref<32x1xf32, #tpu.memory_space<vmem>>, vector<32x1xf32>
    %4 = vector.broadcast %3 : vector<32x1xf32> to vector<32x128xf32>
    %5 = arith.addf %2, %4 : vector<32x128xf32>
    %cst_5 = arith.constant 0.000000e+00 : f32
    %6 = vector.broadcast %cst_5 : f32 to vector<32x128xf32>
    %7 = arith.maximumf %5, %6 : vector<32x128xf32>
    %c0_6 = arith.constant 0 : index
    %c0_7 = arith.constant 0 : index
    %8 = vector.load %arg4[%c0_6, %c0_7] : memref<2x32xf32, #tpu.memory_space<vmem>>, vector<2x32xf32>
    %cst_8 = arith.constant dense<0.000000e+00> : vector<2x128xf32>
    %9 = tpu.matmul %8, %7, %cst_8 {dimension_numbers = #tpu.dot_dimension_numbers<[1], [0], [0], [1], [0, 0, 1, 1], [], []>} : vector<2x32xf32>, vector<32x128xf32>, vector<2x128xf32> -> vector<2x128xf32>
    %c0_9 = arith.constant 0 : index
    %c0_10 = arith.constant 0 : index
    %10 = vector.load %arg5[%c0_9, %c0_10] : memref<2x1xf32, #tpu.memory_space<vmem>>, vector<2x1xf32>
    %11 = vector.broadcast %10 : vector<2x1xf32> to vector<2x128xf32>
    %12 = arith.addf %9, %11 : vector<2x128xf32>
    %13 = vector.extract_strided_slice %12 {offsets = [1, 0], sizes = [1, 128], strides = [1, 1]} : vector<2x128xf32> to vector<1x128xf32>
    %14 = vector.extract_strided_slice %12 {offsets = [0, 0], sizes = [1, 128], strides = [1, 1]} : vector<2x128xf32> to vector<1x128xf32>
    %15 = arith.subf %13, %14 : vector<1x128xf32>
    %cst_11 = arith.constant 0.000000e+00 : f32
    %16 = vector.broadcast %cst_11 : f32 to vector<1x128xf32>
    %17 = arith.subf %16, %15 : vector<1x128xf32>
    %18 = math.exp %17 : vector<1x128xf32>
    %cst_12 = arith.constant 1.000000e+00 : f32
    %19 = vector.broadcast %cst_12 : f32 to vector<1x128xf32>
    %20 = arith.addf %19, %18 : vector<1x128xf32>
    %cst_13 = arith.constant 1.000000e+00 : f32
    %21 = vector.broadcast %cst_13 : f32 to vector<1x128xf32>
    %22 = arith.divf %21, %20 : vector<1x128xf32>
    %cst_14 = arith.constant 1.000000e+00 : f32
    %23 = vector.broadcast %cst_14 : f32 to vector<1x128xf32>
    %24 = arith.subf %23, %22 : vector<1x128xf32>
    %c0_15 = arith.constant 0 : index
    %c0_16 = arith.constant 0 : index
    %25 = vector.load %arg6[%c0_15, %c0_16] : memref<2x128xf32, #tpu.memory_space<vmem>>, vector<1x128xf32>
    tpu.vector_store %arg6[%c0_15, %c0_16], %24 {strides = array<i32>} : memref<2x128xf32, #tpu.memory_space<vmem>>, vector<1x128xf32>,
    %c1 = arith.constant 1 : index
    %c0_17 = arith.constant 0 : index
    %26 = vector.load %arg6[%c1, %c0_17] : memref<2x128xf32, #tpu.memory_space<vmem>>, vector<1x128xf32>
    tpu.vector_store %arg6[%c1, %c0_17], %22 {strides = array<i32>} : memref<2x128xf32, #tpu.memory_space<vmem>>, vector<1x128xf32>,
    return
  }
  func.func @transform_0(%arg0: i32) -> (i32, i32) {
    %c0_i32 = arith.constant 0 : i32
    %c0_i32_0 = arith.constant 0 : i32
    return %c0_i32, %arg0 : i32, i32
  }
  func.func @transform_1(%arg0: i32) -> (i32, i32) {
    %c0_i32 = arith.constant 0 : i32
    %c0_i32_0 = arith.constant 0 : i32
    %c0_i32_1 = arith.constant 0 : i32
    return %c0_i32, %c0_i32_0 : i32, i32
  }
  func.func @transform_2(%arg0: i32) -> (i32, i32) {
    %c0_i32 = arith.constant 0 : i32
    %c0_i32_0 = arith.constant 0 : i32
    %c0_i32_1 = arith.constant 0 : i32
    return %c0_i32, %c0_i32_0 : i32, i32
  }
  func.func @transform_3(%arg0: i32) -> (i32, i32) {
    %c0_i32 = arith.constant 0 : i32
    %c0_i32_0 = arith.constant 0 : i32
    %c0_i32_1 = arith.constant 0 : i32
    return %c0_i32, %c0_i32_0 : i32, i32
  }
  func.func @transform_4(%arg0: i32) -> (i32, i32) {
    %c0_i32 = arith.constant 0 : i32
    %c0_i32_0 = arith.constant 0 : i32
    %c0_i32_1 = arith.constant 0 : i32
    return %c0_i32, %c0_i32_0 : i32, i32
  }
  func.func @transform_5(%arg0: i32) -> (i32, i32) {
    %c0_i32 = arith.constant 0 : i32
    %c0_i32_0 = arith.constant 0 : i32
    return %c0_i32, %arg0 : i32, i32
  }
}

</mosaic_0001>

<llo_original>
// kernel: tpu_custom_call.1
$region0: #{tpu_custom_call.1}
  #allocation0 [shape = 'u32[]', space=smem, size = 0x4, offset = 0x4, fixed_abs, tag = 'smem constant byte address 0x4 - core index']
  #allocation1 [shape = 'u32[144,128]{1,0:T(1,128)}', space=vmem, size = 0x12000, scoped, tag = 'internal scratch']
  %s0 = inlined_call_operand.vmem [shape: f32[4,128], index: 0, kind: input, shape index: {}]
  %s1 = inlined_call_operand.vmem [shape: f32[32,4], index: 1, kind: input, shape index: {}]
  %s2 = inlined_call_operand.vmem [shape: f32[32,1], index: 2, kind: input, shape index: {}]
  %s3 = inlined_call_operand.vmem [shape: f32[2,32], index: 3, kind: input, shape index: {}]
  %s4 = inlined_call_operand.vmem [shape: f32[2,1], index: 4, kind: input, shape index: {}]
  %s5 = inlined_call_operand.hbm [shape: f32[2,128], index: 5, kind: output, shape index: {}]
  %s6 = sld [smem:[#allocation0]]
  $region30: #{tpu_custom_call.1} parent=0
    _
  %s8 = ssub.s32 1, %s6
  %s9 = scalar_select 0, %s8, %s6
  $region1: #{tpu_custom_call.1} parent=0
    #allocation2 [shape = 'u8[1024]{0}', space=vmem, size = 0x400, scoped, tag = 'output window, operand 0, single buffered']
    #allocation3 [shape = 's32[1]{0}', space=sflag, size = 0x4, scoped, tag = 'scoped memory for tpu_custom_call.1']
    %10 = vsyncpa [#allocation3], 0
    // Predicated region
    $region2: #{tpu_custom_call.1} parent=1 // pred_check
      _
    $region3: #{tpu_custom_call.1} parent=1 // pred_check_branch
      %12 = sbr.rel (0) target = $region5
    $region4: #{tpu_custom_call.1} parent=1 // pred_region
      _
    $region5: #{tpu_custom_call.1} parent=1 // pred_fallthru
      _
    // Predicated region
    $region6: #{tpu_custom_call.1} parent=1 // pred_check
      _
    $region7: #{tpu_custom_call.1} parent=1 // pred_check_branch
      %14 = sbr.rel (0) target = $region9
    $region8: #{tpu_custom_call.1} parent=1 // pred_region
      _
    $region9: #{tpu_custom_call.1} parent=1 // pred_fallthru
      _
    // Predicated region
    $region10: #{tpu_custom_call.1} parent=1 // pred_check
      _
    $region11: #{tpu_custom_call.1} parent=1 // pred_check_branch
      %16 = sbr.rel (0) target = $region13
    $region12: #{tpu_custom_call.1} parent=1 // pred_region
      _
    $region13: #{tpu_custom_call.1} parent=1 // pred_fallthru
      _
    // Predicated region
    $region14: #{tpu_custom_call.1} parent=1 // pred_check
      _
    $region15: #{tpu_custom_call.1} parent=1 // pred_check_branch
      %18 = sbr.rel (0) target = $region17
    $region16: #{tpu_custom_call.1} parent=1 // pred_region
      _
    $region17: #{tpu_custom_call.1} parent=1 // pred_fallthru
      _
    // Predicated region
    $region18: #{tpu_custom_call.1} parent=1 // pred_check
      _
    $region19: #{tpu_custom_call.1} parent=1 // pred_check_branch
      %20 = sbr.rel (0) target = $region21
    $region20: #{tpu_custom_call.1} parent=1 // pred_region
      _
    $region21: #{tpu_custom_call.1} parent=1 // pred_fallthru
      _
    %v21 = vld [vmem:[%s0] sm:$0xf]
    %v22 = vld [vmem:[%s1] sm:$0xff]
    %v23 = vld [vmem:[%s1 + $0x8] sm:$0xff]
    %v24 = vld [vmem:[%s1 + $0x10] sm:$0xff]
    %v25 = vld [vmem:[%s1 + $0x18] sm:$0xff]
    %v26 = vld [vmem:[%s2] sm:$0xff]
    %v27 = vld [vmem:[%s2 + $0x8] sm:$0xff]
    %v28 = vld [vmem:[%s2 + $0x10] sm:$0xff]
    %v29 = vld [vmem:[%s2 + $0x18] sm:$0xff]
    %31 = vset.pattern.permute.xlu0 0
    %32 = vperm.xlu0 %31, %v26
    %v33 = vpop.permute.xlu0 %32
    %36 = vset.pattern.permute.xlu0 0
    %37 = vperm.xlu0 %36, %v27
    %v38 = vpop.permute.xlu0 %37
    %41 = vset.pattern.permute.xlu0 0
    %42 = vperm.xlu0 %41, %v28
    %v43 = vpop.permute.xlu0 %42
    %46 = vset.pattern.permute.xlu0 0
    %47 = vperm.xlu0 %46, %v29
    %v48 = vpop.permute.xlu0 %47
    %vm50 = vcmask 31744
    %v52 = vsel %vm50, %v22, 0
    %v55 = vsel %vm50, %v23, 0
    %v58 = vsel %vm50, %v24, 0
    %v61 = vsel %vm50, %v25, 0
    %vm63 = vcmask 1043456
    %v65 = vsel %vm63, %v21, 0
    %67 = vmatprep.subr.mxu0 0.0
    %68 = vmatpush1.msra.mxu0 0.0
    %69 = vmatprep.subr.mxu0 0.0
    %70 = vmatpush1.msra.mxu0 0.0
    %71 = vmatprep.subr.mxu0 0.0
    %72 = vmatpush1.msra.mxu0 0.0
    %73 = vmatprep.subr.mxu0 0.0
    %74 = vmatpush1.msra.mxu0 0.0
    %75 = vmatprep.subr.mxu0 0.0
    %76 = vmatpush1.msra.mxu0 0.0
    %77 = vmatprep.subr.mxu0 0.0
    %78 = vmatpush1.msra.mxu0 0.0
    %79 = vmatprep.subr.mxu0 0.0
    %80 = vmatpush1.msra.mxu0 0.0
    %81 = vmatprep.subr.mxu0 0.0
    %82 = vmatpush1.msra.mxu0 0.0
    %83 = vmatprep.subr.mxu0 0.0
    %84 = vmatpush1.msra.mxu0 0.0
    %85 = vmatprep.subr.mxu0 0.0
    %86 = vmatpush1.msra.mxu0 0.0
    %87 = vmatprep.subr.mxu0 0.0
    %88 = vmatpush1.msra.mxu0 0.0
    %89 = vmatprep.subr.mxu0 0.0
    %90 = vmatpush1.msra.mxu0 0.0
    %91 = vmatprep.subr.mxu0 0.0
    %92 = vmatpush1.msra.mxu0 0.0
    %93 = vmatprep.subr.mxu0 0.0
    %94 = vmatpush1.msra.mxu0 0.0
    %95 = vmatprep.subr.mxu0 0.0
    %96 = vmatpush1.msra.mxu0 0.0
    %97 = vmatprep.subr.mxu0 0.0
    %98 = vmatpush1.msra.mxu0 %v65
    %99 = vmatprep.subr.mxu0 0.0
    %100 = vmatpush2.msra.mxu0 0.0
    %101 = vmatprep.subr.mxu0 0.0
    %102 = vmatpush2.msra.mxu0 0.0
    %103 = vmatprep.subr.mxu0 0.0
    %104 = vmatpush2.msra.mxu0 0.0
    %105 = vmatprep.subr.mxu0 0.0
    %106 = vmatpush2.msra.mxu0 0.0
    %107 = vmatprep.subr.mxu0 0.0
    %108 = vmatpush2.msra.mxu0 0.0
    %109 = vmatprep.subr.mxu0 0.0
    %110 = vmatpush2.msra.mxu0 0.0
    %111 = vmatprep.subr.mxu0 0.0
    %112 = vmatpush2.msra.mxu0 0.0
    %113 = vmatprep.subr.mxu0 0.0
    %114 = vmatpush2.msra.mxu0 0.0
    %115 = vmatprep.subr.mxu0 0.0
    %116 = vmatpush2.msra.mxu0 0.0
    %117 = vmatprep.subr.mxu0 0.0
    %118 = vmatpush2.msra.mxu0 0.0
    %119 = vmatprep.subr.mxu0 0.0
    %120 = vmatpush2.msra.mxu0 0.0
    %121 = vmatprep.subr.mxu0 0.0
    %122 = vmatpush2.msra.mxu0 0.0
    %123 = vmatprep.subr.mxu0 0.0
    %124 = vmatpush2.msra.mxu0 0.0
    %125 = vmatprep.subr.mxu0 0.0
    %126 = vmatpush2.msra.mxu0 0.0
    %127 = vmatprep.subr.mxu0 0.0
    %128 = vmatpush2.msra.mxu0 0.0
    %129 = vmatprep.subr.mxu0 0.0
    %130 = vmatpush2.msra.mxu0 0.0
    %131 = vmatprep.mubr.f32.mxu0 0.0
    %132 = vmatmul.mubr.f32.gmra.mxu0 %v52
    %v133 = vpop.f32.mrf.mxu0
    %v134 = vadd.f32 %v33, %v133
    %v135 = vpop.f32.mrf.mxu0
    %136 = vmatprep.mubr.f32.mxu0 0.0
    %137 = vmatmul.mubr.f32.gmra.mxu0 %v55
    %v138 = vpop.f32.mrf.mxu0
    %v139 = vadd.f32 %v38, %v138
    %v140 = vpop.f32.mrf.mxu0
    %141 = vmatprep.mubr.f32.mxu0 0.0
    %142 = vmatmul.mubr.f32.gmra.mxu0 %v58
    %v143 = vpop.f32.mrf.mxu0
    %v144 = vadd.f32 %v43, %v143
    %v145 = vpop.f32.mrf.mxu0
    %146 = vmatprep.mubr.f32.mxu0 0.0
    %147 = vmatmul.mubr.f32.gmra.mxu0 %v61
    %v148 = vpop.f32.mrf.mxu0
    %v149 = vadd.f32 %v48, %v148
    %v150 = vpop.f32.mrf.mxu0
    %151 = vdwg.mxu0
    %v152 = vmax.f32 %v134, 0.0
    %v153 = vmax.f32 %v139, 0.0
    %v154 = vmax.f32 %v144, 0.0
    %v155 = vmax.f32 %v149, 0.0
    %v156 = vld [vmem:[%s3] sm:$0x3]
    %v157 = vld [vmem:[%s4] sm:$0x3]
    %159 = vset.pattern.permute.xlu0 0
    %160 = vperm.xlu0 %159, %v157
    %v161 = vpop.permute.xlu0 %160
    %vm163 = vcmask 261120
    %v165 = vsel %vm163, %v156, 0
    %167 = vmatprep.subr.mxu0 0.0
    %168 = vmatpush1.msra.mxu0 0.0
    %169 = vmatprep.subr.mxu0 0.0
    %170 = vmatpush1.msra.mxu0 0.0
    %171 = vmatprep.subr.mxu0 0.0
    %172 = vmatpush1.msra.mxu0 0.0
    %173 = vmatprep.subr.mxu0 0.0
    %174 = vmatpush1.msra.mxu0 0.0
    %175 = vmatprep.subr.mxu0 0.0
    %176 = vmatpush1.msra.mxu0 0.0
    %177 = vmatprep.subr.mxu0 0.0
    %178 = vmatpush1.msra.mxu0 0.0
    %179 = vmatprep.subr.mxu0 0.0
    %180 = vmatpush1.msra.mxu0 0.0
    %181 = vmatprep.subr.mxu0 0.0
    %182 = vmatpush1.msra.mxu0 0.0
    %183 = vmatprep.subr.mxu0 0.0
    %184 = vmatpush1.msra.mxu0 0.0
    %185 = vmatprep.subr.mxu0 0.0
    %186 = vmatpush1.msra.mxu0 0.0
    %187 = vmatprep.subr.mxu0 0.0
    %188 = vmatpush1.msra.mxu0 0.0
    %189 = vmatprep.subr.mxu0 0.0
    %190 = vmatpush1.msra.mxu0 0.0
    %191 = vmatprep.subr.mxu0 0.0
    %192 = vmatpush1.msra.mxu0 %v155
    %193 = vmatprep.subr.mxu0 0.0
    %194 = vmatpush1.msra.mxu0 %v154
    %195 = vmatprep.subr.mxu0 0.0
    %196 = vmatpush1.msra.mxu0 %v153
    %197 = vmatprep.subr.mxu0 0.0
    %198 = vmatpush1.msra.mxu0 %v152
    %199 = vmatprep.subr.mxu0 0.0
    %200 = vmatpush2.msra.mxu0 0.0
    %201 = vmatprep.subr.mxu0 0.0
    %202 = vmatpush2.msra.mxu0 0.0
    %203 = vmatprep.subr.mxu0 0.0
    %204 = vmatpush2.msra.mxu0 0.0
    %205 = vmatprep.subr.mxu0 0.0
    %206 = vmatpush2.msra.mxu0 0.0
    %207 = vmatprep.subr.mxu0 0.0
    %208 = vmatpush2.msra.mxu0 0.0
    %209 = vmatprep.subr.mxu0 0.0
    %210 = vmatpush2.msra.mxu0 0.0
    %211 = vmatprep.subr.mxu0 0.0
    %212 = vmatpush2.msra.mxu0 0.0
    %213 = vmatprep.subr.mxu0 0.0
    %214 = vmatpush2.msra.mxu0 0.0
    %215 = vmatprep.subr.mxu0 0.0
    %216 = vmatpush2.msra.mxu0 0.0
    %217 = vmatprep.subr.mxu0 0.0
    %218 = vmatpush2.msra.mxu0 0.0
    %219 = vmatprep.subr.mxu0 0.0
    %220 = vmatpush2.msra.mxu0 0.0
    %221 = vmatprep.subr.mxu0 0.0
    %222 = vmatpush2.msra.mxu0 0.0
    %223 = vmatprep.subr.mxu0 0.0
    %224 = vmatpush2.msra.mxu0 0.0
    %225 = vmatprep.subr.mxu0 0.0
    %226 = vmatpush2.msra.mxu0 0.0
    %227 = vmatprep.subr.mxu0 0.0
    %228 = vmatpush2.msra.mxu0 0.0
    %229 = vmatprep.subr.mxu0 0.0
    %230 = vmatpush2.msra.mxu0 0.0
    %231 = vmatprep.mubr.f32.mxu0 0.0
    %232 = vmatmul.mubr.f32.gmra.mxu0 %v165
    %v233 = vpop.f32.mrf.mxu0
    %v234 = vadd.f32 %v161, %v233
    %v235 = vpop.f32.mrf.mxu0
    %236 = vdwg.mxu0
    %v238 = vrot.slane %v234, 7
    %v240 = vsub.f32 %v234, %v238
    %v241 = vsub.f32 0.0, %v240
    %v242 = vmul.f32 %v241, 1.442695
    %v243 = vpow.pop %v242
    %v244 = vadd.f32 %v243, 1.0
    %v245 = vrcp.pop %v244
    %v246 = vmul.f32 1.0, %v245
    %v247 = vsub.f32 1.0, %v246
    %248 = vst [vmem:[#allocation2 - $0x1] sm:$0x2] %v247
    %249 = vst [vmem:[#allocation2] sm:$0x2] %v246
    // Predicated region
    $region22: #{tpu_custom_call.1} parent=1 // pred_check
      _
    $region23: #{tpu_custom_call.1} parent=1 // pred_check_branch
      %251 = sbr.rel (0) target = $region25
    $region24: #{tpu_custom_call.1} parent=1 // pred_region
      %s253 = ssub.s32 32, 32
      %254 = vsyncadd [#allocation3], %s253
      %s256 = sshll.u32 [#allocation2], 4
      %s257 = int_to_ptr.vmem [resolvable:$true] %s256
      %259 = dma.vmem_to_hbm [thread:$0]  %s257, 32, %s5, [#allocation3]
    $region25: #{tpu_custom_call.1} parent=1 // pred_fallthru
      _
    // Predicated region
    $region26: #{tpu_custom_call.1} parent=1 // pred_check
      _
    $region27: #{tpu_custom_call.1} parent=1 // pred_check_branch
      %261 = sbr.rel (0) target = $region29
    $region28: #{tpu_custom_call.1} parent=1 // pred_region
      %262 = dma.done [#allocation3], 32
    $region29: #{tpu_custom_call.1} parent=1 // pred_fallthru
      _
    %263 = vsyncpa [#allocation3], 1

</llo_original>
